<compile_context>
chip_gen: v5e
topology: v5e:2x2
jax: 0.10.0
libtpu: 0.0.40
codegen_flags: <defaults>
</compile_context>

<pallas_src>
import math

import jax
import jax.numpy as jnp
from jax.experimental import pallas as pl
from jax.experimental.pallas import tpu as pltpu


# ----------------------------------------------------------------------------
# Kernel: one row tile, ALL branches at once.
#   fused 1x1-conv + folded-BN + ReLU  ->  bf16 flat conv feature tile
#                                      ->  f32 per-image spatial mean
# grid = (num_m,) over b_tile-image row tiles.
# ----------------------------------------------------------------------------
def fused_refine_kernel(x_ref, w_ref, b_ref, avg_ref, conv_ref, vec_ref):
    x = x_ref[...]                       # (rows, C_in)      bf16
    w = w_ref[...]                       # (C_in, K*C_out)   bf16 (all branches)
    y = jnp.dot(x, w, preferred_element_type=jnp.float32) + b_ref[...]
    y = jnp.maximum(y, 0.0)              # ReLU, f32
    y_lo = y.astype(jnp.bfloat16)
    # Lane-dense bf16 store of the fused conv-feature tile.
    conv_ref[...] = y_lo
    # AdaptiveAvgPool2d((1,1)) per image/branch via a tiny averaging matmul:
    # (b_tile, rows) @ (rows, K*C_out) -> (b_tile, K*C_out), f32 accumulation.
    vec_ref[0] = jnp.dot(avg_ref[...], y_lo, preferred_element_type=jnp.float32)


# ----------------------------------------------------------------------------
# Parameter construction (deterministic, matches module __init__ shapes)
# ----------------------------------------------------------------------------
def init_params(key, feat_size, comp_size, top_k, code_length):
    K = top_k + 1
    keys = jax.random.split(key, 2 * K + 1)
    conv_w, conv_b = [], []
    fan_out = comp_size  # 1x1 conv: fan_out = C_out * 1 * 1
    for i in range(K):
        # kaiming_normal_(mode='fan_out', nonlinearity='relu')
        std = math.sqrt(2.0 / fan_out)
        w = std * jax.random.normal(keys[2 * i], (comp_size, feat_size),
                                    dtype=jnp.float32)
        # default Conv2d bias init: U(-1/sqrt(fan_in), 1/sqrt(fan_in))
        bound = 1.0 / math.sqrt(feat_size)
        b = jax.random.uniform(keys[2 * i + 1], (comp_size,), jnp.float32,
                               -bound, bound)
        conv_w.append(w)
        conv_b.append(b)
    conv_w = jnp.stack(conv_w)                 # (K, C_out, C_in)
    conv_b = jnp.stack(conv_b)                 # (K, C_out)
    # BatchNorm (eval-mode running stats): weight=1, bias=0, mean=0, var=1
    bn_gamma = jnp.ones((K, comp_size), jnp.float32)
    bn_beta = jnp.zeros((K, comp_size), jnp.float32)
    bn_mean = jnp.zeros((K, comp_size), jnp.float32)
    bn_var = jnp.ones((K, comp_size), jnp.float32)
    # hash_map: kaiming_uniform_(a=sqrt(5)) on (code_length, rep_size)
    rep_size = comp_size * K
    gain = math.sqrt(2.0 / (1.0 + 5.0))
    bound = gain * math.sqrt(3.0 / rep_size)
    hash_map = jax.random.uniform(keys[-1], (code_length, rep_size),
                                  jnp.float32, -bound, bound)
    return dict(conv_w=conv_w, conv_b=conv_b, bn_gamma=bn_gamma,
                bn_beta=bn_beta, bn_mean=bn_mean, bn_var=bn_var,
                hash_map=hash_map)


def prepare_params(params, eps=1e-5):
    """Fold conv+BN (eval-mode), fuse the K branch weights into one matrix,
    cast MXU operands to bf16, pre-transpose the hash projection."""
    conv_w, conv_b = params["conv_w"], params["conv_b"]
    gamma, beta = params["bn_gamma"], params["bn_beta"]
    mean, var = params["bn_mean"], params["bn_var"]
    # y = scale*(W x + b) + (beta - mean*scale), scale = gamma/sqrt(var+eps)
    scale = gamma / jnp.sqrt(var + eps)                  # (K, C_out)
    w_eff = conv_w * scale[:, :, None]                   # (K, C_out, C_in)
    b_eff = conv_b * scale + beta - mean * scale         # (K, C_out)
    K, C_out, C_in = w_eff.shape
    # (K, C_out, C_in) -> (C_in, K*C_out): column index k*C_out + c matches
    # torch.cat(vec_group, dim=1) ordering downstream.
    w_all = jnp.transpose(w_eff, (2, 0, 1)).reshape(C_in, K * C_out)
    b_all = b_eff.reshape(1, K * C_out)
    return dict(
        w_all=w_all.astype(jnp.bfloat16),                # (C_in, K*C_out)
        b_all=b_all.astype(jnp.float32),                 # (1,   K*C_out)
        hash_map_t=jnp.transpose(params["hash_map"]).astype(jnp.float32),
    )


def _pick_b_tile(B, HW, target_rows=512):
    """Divisor of B such that rows = b_tile*HW satisfies the (16, 128)
    sublane rule (or is the single full tile), rows is near target_rows,
    and B // b_tile is even (>= 2) for balanced megacore sharding."""
    best_key, best_bt = None, B
    for bt in range(1, B + 1):
        if B % bt:
            continue
        rows = bt * HW
        num_m = B // bt
        if rows % 16 != 0 and num_m != 1:
            continue  # would violate block-shape divisibility for bf16 tiles
        even_penalty = 0 if (num_m >= 2 and num_m % 2 == 0) else 1
        key = (even_penalty, abs(rows - target_rows))
        if best_key is None or key < best_key:
            best_key, best_bt = key, bt
    return best_bt


def _vmem_cap_bytes():
    """Per-core VMEM capacity minus headroom (conservative 64 MiB default)."""
    cap = 64 * 1024 * 1024
    try:
        cap = int(pltpu.get_tpu_info().vmem_capacity_bytes)
    except Exception:
        pass
    return max(cap - 8 * 1024 * 1024, 16 * 1024 * 1024)


# ----------------------------------------------------------------------------
# Forward wrapper
# ----------------------------------------------------------------------------
def agmh_forward(x_nchw, params, prepared=None, top_k=5, b_tile=None):
    B, C_in, H, W = x_nchw.shape
    K = top_k + 1
    HW = H * W
    if prepared is None:
        prepared = prepare_params(params)
    w_all = prepared["w_all"]                  # (C_in, K*C_out) bf16
    b_all = prepared["b_all"]                  # (1,   K*C_out)  f32
    hash_map_t = prepared["hash_map_t"]        # (rep_size, code_length)
    KC = w_all.shape[1]
    C_out = KC // K

    if b_tile is None:
        b_tile = _pick_b_tile(B, HW)
    assert B % b_tile == 0
    num_m = B // b_tile
    rows = b_tile * HW
    assert rows % 16 == 0 or num_m == 1, "row tile violates (16,128) rule"

    # NCHW -> (B*HW, C_in) channels-last flattened; bf16 MXU operand.
    # TODO(synk): if the upstream backbone can emit NHWC directly, skip this.
    x2d = jnp.transpose(x_nchw, (0, 2, 3, 1)).reshape(B * HW, C_in)
    x2d = x2d.astype(jnp.bfloat16)

    # bf16 averaging matrix for AdaptiveAvgPool2d((1,1)); constant block index
    # -> fetched once; avoids an in-kernel (B, HW, C) reshape when HW is not
    # a multiple of 8 (e.g. HW = 49 at production shapes).
    row_img = jnp.arange(rows, dtype=jnp.int32) // HW                # (rows,)
    avg_mat = (row_img[None, :] == jnp.arange(b_tile, dtype=jnp.int32)[:, None])
    avg_mat = (avg_mat.astype(jnp.float32) / float(HW)).astype(jnp.bfloat16)

    # VMEM budget: double-buffered tiles + f32 matmul accumulator, capped by
    # the physical per-core capacity (64 MiB on v7x) minus headroom.
    # TODO(synk): the constant-index weight/avg specs could use
    #   pipeline_mode=pl.Buffered(1) to drop one weight buffer on v7x.
    per_block = (2 * rows * C_in * 2 +        # x tile (bf16, 2 buffers)
                 2 * C_in * KC * 2 +          # fused weight (bf16, 2 buffers)
                 2 * KC * 4 +                 # bias (f32)
                 2 * b_tile * rows * 2 +      # avg matrix (bf16)
                 2 * rows * KC * 2 +          # conv out tile (bf16, 2 buffers)
                 2 * b_tile * KC * 4 +        # vec out tile (f32)
                 rows * KC * 4)               # f32 accumulator intermediate
    vmem_limit = int(min(_vmem_cap_bytes(), per_block + 4 * 1024 * 1024))

    conv_out, vec_out = pl.pallas_call(
        fused_refine_kernel,
        grid=(num_m,),
        in_specs=[
            pl.BlockSpec((rows, C_in), lambda m: (m, 0)),
            pl.BlockSpec((C_in, KC), lambda m: (0, 0)),      # resident weight
            pl.BlockSpec((1, KC), lambda m: (0, 0)),
            pl.BlockSpec((b_tile, rows), lambda m: (0, 0)),
        ],
        out_specs=[
            pl.BlockSpec((rows, KC), lambda m: (m, 0)),
            pl.BlockSpec((1, b_tile, KC), lambda m: (m, 0, 0)),
        ],
        out_shape=[
            jax.ShapeDtypeStruct((B * HW, KC), jnp.bfloat16),
            jax.ShapeDtypeStruct((num_m, b_tile, KC), jnp.float32),
        ],
        compiler_params=pltpu.CompilerParams(
            dimension_semantics=("parallel",),
            vmem_limit_bytes=vmem_limit),
    )(x2d, w_all, b_all, avg_mat)

    # Pooled vectors: column layout [branch0 C_out | branch1 C_out | ...]
    # already matches torch.cat(vec_group, dim=1) -> no transpose needed.
    feat_vec = vec_out.reshape(B, KC)

    # Hash projection + tanh (tiny lane-width-12 matmul -> leave to XLA).
    ret = jnp.tanh(jnp.dot(feat_vec, hash_map_t,
                           preferred_element_type=jnp.float32))

    # feat_group: single stacked NHWC->NCHW layout change (f32 to match the
    # PyTorch module); the bf16 conv_out halves the read side of this op.
    # TODO(synk): keep channels-last and fold this into the CHExtAttn consumer
    #   (source unavailable) to drop the extra HBM round trip entirely.
    conv_nchw = jnp.transpose(conv_out.reshape(B, H, W, K, C_out),
                              (3, 0, 4, 1, 2)).astype(jnp.float32)
    feat_group = [conv_nchw[i] for i in range(K)]
    attn_group = []  # TODO(synk): CHExtAttn definition unavailable; skipped.
    return ret, x_nchw, feat_group, attn_group


if __name__ == "__main__":
    # Small shapes consistent with the module (feat_size scaled down from 2048).
    B, feat_size, H, W = 2, 32, 8, 8
    top_k = 5
    comp_size = feat_size // 4
    code_length = 12

    key = jax.random.PRNGKey(0)
    k_x, k_p = jax.random.split(key)
    x = jax.random.normal(k_x, (B, feat_size, H, W), dtype=jnp.float32)
    params = init_params(k_p, feat_size, comp_size, top_k, code_length)
    prepared = prepare_params(params)

    # Auto b_tile: B=2, HW=64 -> b_tile=1, grid=(2,) (exercises the row-tile
    # pipeline and the megacore-friendly even tile count).
    ret, out_detached, feat_group, attn_group = agmh_forward(
        x, params, prepared=prepared, top_k=top_k)
    jax.block_until_ready(ret)
    jax.block_until_ready(feat_group)

    assert ret.shape == (B, code_length)
    assert len(feat_group) == top_k + 1
    assert feat_group[0].shape == (B, comp_size, H, W)
    assert bool(jnp.all(jnp.isfinite(ret)))
    print("KERNEL_OK")
</pallas_src>

<mosaic_0001>
module attributes {stable_mosaic.version = 11 : i64} {
  func.func @fused_refine_kernel(%arg0: i32, %arg1: memref<64x32xbf16, #tpu.memory_space<vmem>>, %arg2: memref<32x48xbf16, #tpu.memory_space<vmem>>, %arg3: memref<1x48xf32, #tpu.memory_space<vmem>>, %arg4: memref<1x64xbf16, #tpu.memory_space<vmem>>, %arg5: memref<64x48xbf16, #tpu.memory_space<vmem>>, %arg6: memref<1x1x48xf32, #tpu.memory_space<vmem>>) attributes {dimension_semantics = [#tpu.dimension_semantics<parallel>], iteration_bounds = array<i64: 2>, scalar_prefetch = 0 : i64, scratch_operands = 0 : i64, tpu.core_type = #tpu.core_type<tc>, window_params = [{transform_indices = @transform_0, window_bounds = array<i64: 64, 32>}, {pipeline_mode = #tpu.pipeline_mode<synchronous>, transform_indices = @transform_1, window_bounds = array<i64: 32, 48>}, {pipeline_mode = #tpu.pipeline_mode<synchronous>, transform_indices = @transform_2, window_bounds = array<i64: 1, 48>}, {pipeline_mode = #tpu.pipeline_mode<synchronous>, transform_indices = @transform_3, window_bounds = array<i64: 1, 64>}, {transform_indices = @transform_4, window_bounds = array<i64: 64, 48>}, {transform_indices = @transform_5, window_bounds = array<i64: 1, 1, 48>}]} {
    %c0 = arith.constant 0 : index
    %c0_0 = arith.constant 0 : index
    %0 = vector.load %arg1[%c0, %c0_0] : memref<64x32xbf16, #tpu.memory_space<vmem>>, vector<64x32xbf16>
    %c0_1 = arith.constant 0 : index
    %c0_2 = arith.constant 0 : index
    %1 = vector.load %arg2[%c0_1, %c0_2] : memref<32x48xbf16, #tpu.memory_space<vmem>>, vector<32x48xbf16>
    %cst = arith.constant dense<0.000000e+00> : vector<64x48xf32>
    %2 = tpu.matmul %0, %1, %cst {dimension_numbers = #tpu.dot_dimension_numbers<[1], [0], [0], [1], [0, 0, 1, 1], [], []>} : vector<64x32xbf16>, vector<32x48xbf16>, vector<64x48xf32> -> vector<64x48xf32>
    %c0_3 = arith.constant 0 : index
    %c0_4 = arith.constant 0 : index
    %3 = vector.load %arg3[%c0_3, %c0_4] : memref<1x48xf32, #tpu.memory_space<vmem>>, vector<1x48xf32>
    %4 = vector.broadcast %3 : vector<1x48xf32> to vector<64x48xf32>
    %5 = arith.addf %2, %4 : vector<64x48xf32>
    %cst_5 = arith.constant 0.000000e+00 : f32
    %6 = vector.broadcast %cst_5 : f32 to vector<64x48xf32>
    %7 = arith.maximumf %5, %6 : vector<64x48xf32>
    %8 = arith.truncf %7 : vector<64x48xf32> to vector<64x48xbf16>
    %c0_6 = arith.constant 0 : index
    %c0_7 = arith.constant 0 : index
    %9 = vector.load %arg5[%c0_6, %c0_7] : memref<64x48xbf16, #tpu.memory_space<vmem>>, vector<64x48xbf16>
    tpu.vector_store %arg5[%c0_6, %c0_7], %8 {strides = array<i32>} : memref<64x48xbf16, #tpu.memory_space<vmem>>, vector<64x48xbf16>,
    %c0_8 = arith.constant 0 : index
    %c0_9 = arith.constant 0 : index
    %10 = vector.load %arg4[%c0_8, %c0_9] : memref<1x64xbf16, #tpu.memory_space<vmem>>, vector<1x64xbf16>
    %cst_10 = arith.constant dense<0.000000e+00> : vector<1x48xf32>
    %11 = tpu.matmul %10, %8, %cst_10 {dimension_numbers = #tpu.dot_dimension_numbers<[1], [0], [0], [1], [0, 0, 1, 1], [], []>} : vector<1x64xbf16>, vector<64x48xbf16>, vector<1x48xf32> -> vector<1x48xf32>
    %c0_11 = arith.constant 0 : index
    %c0_12 = arith.constant 0 : index
    %c0_13 = arith.constant 0 : index
    %12 = vector.load %arg6[%c0_11, %c0_12, %c0_13] : memref<1x1x48xf32, #tpu.memory_space<vmem>>, vector<1x1x48xf32>
    %13 = vector.shape_cast %12 : vector<1x1x48xf32> to vector<1x48xf32>
    %14 = vector.shape_cast %11 : vector<1x48xf32> to vector<1x1x48xf32>
    tpu.vector_store %arg6[%c0_11, %c0_12, %c0_13], %14 {strides = array<i32>} : memref<1x1x48xf32, #tpu.memory_space<vmem>>, vector<1x1x48xf32>,
    return
  }
  func.func @transform_0(%arg0: i32) -> (i32, i32) {
    %c0_i32 = arith.constant 0 : i32
    %c0_i32_0 = arith.constant 0 : i32
    return %arg0, %c0_i32 : i32, i32
  }
  func.func @transform_1(%arg0: i32) -> (i32, i32) {
    %c0_i32 = arith.constant 0 : i32
    %c0_i32_0 = arith.constant 0 : i32
    %c0_i32_1 = arith.constant 0 : i32
    return %c0_i32, %c0_i32_0 : i32, i32
  }
  func.func @transform_2(%arg0: i32) -> (i32, i32) {
    %c0_i32 = arith.constant 0 : i32
    %c0_i32_0 = arith.constant 0 : i32
    %c0_i32_1 = arith.constant 0 : i32
    return %c0_i32, %c0_i32_0 : i32, i32
  }
  func.func @transform_3(%arg0: i32) -> (i32, i32) {
    %c0_i32 = arith.constant 0 : i32
    %c0_i32_0 = arith.constant 0 : i32
    %c0_i32_1 = arith.constant 0 : i32
    return %c0_i32, %c0_i32_0 : i32, i32
  }
  func.func @transform_4(%arg0: i32) -> (i32, i32) {
    %c0_i32 = arith.constant 0 : i32
    %c0_i32_0 = arith.constant 0 : i32
    return %arg0, %c0_i32 : i32, i32
  }
  func.func @transform_5(%arg0: i32) -> (i32, i32, i32) {
    %c0_i32 = arith.constant 0 : i32
    %c0_i32_0 = arith.constant 0 : i32
    %c0_i32_1 = arith.constant 0 : i32
    return %arg0, %c0_i32, %c0_i32_0 : i32, i32, i32
  }
}

</mosaic_0001>

<llo_original>
// kernel: tpu_custom_call.1
$region0: #{tpu_custom_call.1}
  #allocation0 [shape = 'u32[]', space=smem, size = 0x4, offset = 0x4, fixed_abs, tag = 'smem constant byte address 0x4 - core index']
  #allocation1 [shape = 'u32[72,128]{1,0:T(1,128)}', space=vmem, size = 0x9000, scoped, tag = 'internal scratch']
  %s0 = inlined_call_operand.vmem [shape: bf16[128,32], index: 0, kind: input, shape index: {}]
  %s1 = inlined_call_operand.vmem [shape: bf16[32,48], index: 1, kind: input, shape index: {}]
  %s2 = inlined_call_operand.vmem [shape: f32[1,48], index: 2, kind: input, shape index: {}]
  %s3 = inlined_call_operand.vmem [shape: bf16[1,64], index: 3, kind: input, shape index: {}]
  %s4 = inlined_call_operand.vmem [shape: bf16[128,48], index: 4, kind: output, shape index: {0}]
  %s5 = inlined_call_operand.hbm [shape: f32[2,1,48], index: 5, kind: output, shape index: {1}]
  %6 = xla_tuple %s4, %s5
  %s7 = sld [smem:[#allocation0]]
  $region57: #{tpu_custom_call.1} parent=0
    _
  %s9 = ssub.s32 1, %s7
  %s10 = scalar_select 0, %s9, %s7
  $region1: #{tpu_custom_call.1} parent=0
    #allocation2 [shape = 'u8[1024]{0}', space=vmem, size = 0x400, scoped, tag = 'output window, operand 1']
    #allocation3 [shape = 's32[2]{0}', space=sflag, size = 0x8, scoped, tag = 'scoped memory for tpu_custom_call.1']
    %11 = vsyncpa [#allocation3], 0
    %s12 = scalar_lea.sflag [#allocation3], 1
    %13 = vsyncpa %s12, 0
    loop: start=0, step=1, limit=4
    $region2: #{tpu_custom_call.1} parent=1 // loop_pre_header
      _
    $region3: #{tpu_custom_call.1} parent=1 // loop_header
      %s15 = sphi 0, %s19
      %p16 = scmp.ge.s32.totalorder %s15, 4
      %s25 = sphi 0, %s27
      %s28 = sphi 0, %s25
      %s29 = sphi 0, %s28
      %s45 = sphi 0, %s29
      %s49 = sphi 0, %s49
      %s51 = sphi 0, %s49
      %s52 = sphi 0, %s51
      %s66 = sphi 0, %s52
      %s70 = sphi 0, %s70
      %s72 = sphi 0, %s70
      %s73 = sphi 0, %s72
      %s87 = sphi 0, %s73
      %s91 = sphi 0, %s91
      %s93 = sphi 0, %s91
      %s94 = sphi 0, %s93
      %s108 = sphi 0, %s94
      %s114 = sphi 0, %s116
      %s117 = sphi 0, %s114
      %s118 = sphi 0, %s117
      %s134 = sphi 0, %s118
      %s140 = sphi 0, %s142
      %s143 = sphi 0, %s140
      %s144 = sphi 0, %s143
      %s160 = sphi 0, %s144
    $region4: #{tpu_custom_call.1} parent=1 // loop_header_branch
      %18 = sbr.rel (%p16) target = $region8
    $region5: #{tpu_custom_call.1} parent=1 // loop_body
      %s20 = ssub.s32 %s15, 1
      %s21 = ssub.s32 %s15, 2
      %s22 = sadd.s32 %s15, 1
      %s23 = ssub.s32 %s15, %s22
      %p24 = scmp.eq.s32.totalorder %s23, 0
      %s26 = sadd.s32 %s25, 1
      %s27 = scalar_select %p24, %s25, %s26
      %p30 = pneg %p24
      %p31 = scmp.eq.s32.totalorder %s15, 1
      %p32 = por %p30, %p31
      %p33 = scmp.ne.s32.totalorder %s25, %s28
      %p34 = scmp.eq.s32.totalorder %s15, 0
      %p35 = por %p33, %p34
      %p36 = scmp.ne.s32.totalorder %s25, %s28
      %p37 = scmp.eq.s32.totalorder %s20, 1
      %p38 = por %p36, %p37
      %p39 = scmp.ne.s32.totalorder %s28, %s29
      %p40 = scmp.eq.s32.totalorder %s20, 0
      %p41 = por %p39, %p40
      %p42 = scmp.ne.s32.totalorder %s28, %s29
      %p43 = scmp.eq.s32.totalorder %s21, 1
      %p44 = por %p42, %p43
      %p46 = scmp.ne.s32.totalorder %s29, %s45
      %p47 = scmp.eq.s32.totalorder %s21, 0
      %p48 = por %p46, %p47
      %s50 = sadd.s32 %s49, 1
      %p53 = scmp.eq.s32.totalorder %s15, 1
      %p54 = scmp.ne.s32.totalorder %s49, %s51
      %p55 = scmp.eq.s32.totalorder %s15, 0
      %p56 = por %p54, %p55
      %p57 = scmp.ne.s32.totalorder %s49, %s51
      %p58 = scmp.eq.s32.totalorder %s20, 1
      %p59 = por %p57, %p58
      %p60 = scmp.ne.s32.totalorder %s51, %s52
      %p61 = scmp.eq.s32.totalorder %s20, 0
      %p62 = por %p60, %p61
      %p63 = scmp.ne.s32.totalorder %s51, %s52
      %p64 = scmp.eq.s32.totalorder %s21, 1
      %p65 = por %p63, %p64
      %p67 = scmp.ne.s32.totalorder %s52, %s66
      %p68 = scmp.eq.s32.totalorder %s21, 0
      %p69 = por %p67, %p68
      %s71 = sadd.s32 %s70, 1
      %p74 = scmp.eq.s32.totalorder %s15, 1
      %p75 = scmp.ne.s32.totalorder %s70, %s72
      %p76 = scmp.eq.s32.totalorder %s15, 0
      %p77 = por %p75, %p76
      %p78 = scmp.ne.s32.totalorder %s70, %s72
      %p79 = scmp.eq.s32.totalorder %s20, 1
      %p80 = por %p78, %p79
      %p81 = scmp.ne.s32.totalorder %s72, %s73
      %p82 = scmp.eq.s32.totalorder %s20, 0
      %p83 = por %p81, %p82
      %p84 = scmp.ne.s32.totalorder %s72, %s73
      %p85 = scmp.eq.s32.totalorder %s21, 1
      %p86 = por %p84, %p85
      %p88 = scmp.ne.s32.totalorder %s73, %s87
      %p89 = scmp.eq.s32.totalorder %s21, 0
      %p90 = por %p88, %p89
      %s92 = sadd.s32 %s91, 1
      %p95 = scmp.eq.s32.totalorder %s15, 1
      %p96 = scmp.ne.s32.totalorder %s91, %s93
      %p97 = scmp.eq.s32.totalorder %s15, 0
      %p98 = por %p96, %p97
      %p99 = scmp.ne.s32.totalorder %s91, %s93
      %p100 = scmp.eq.s32.totalorder %s20, 1
      %p101 = por %p99, %p100
      %p102 = scmp.ne.s32.totalorder %s93, %s94
      %p103 = scmp.eq.s32.totalorder %s20, 0
      %p104 = por %p102, %p103
      %p105 = scmp.ne.s32.totalorder %s93, %s94
      %p106 = scmp.eq.s32.totalorder %s21, 1
      %p107 = por %p105, %p106
      %p109 = scmp.ne.s32.totalorder %s94, %s108
      %p110 = scmp.eq.s32.totalorder %s21, 0
      %p111 = por %p109, %p110
      %s112 = ssub.s32 %s15, %s22
      %p113 = scmp.eq.s32.totalorder %s112, 0
      %s115 = sadd.s32 %s114, 1
      %s116 = scalar_select %p113, %s114, %s115
      %p119 = pneg %p113
      %p120 = scmp.eq.s32.totalorder %s15, 1
      %p121 = por %p119, %p120
      %p122 = scmp.ne.s32.totalorder %s114, %s117
      %p123 = scmp.eq.s32.totalorder %s15, 0
      %p124 = por %p122, %p123
      %p125 = scmp.ne.s32.totalorder %s114, %s117
      %p126 = scmp.eq.s32.totalorder %s20, 1
      %p127 = por %p125, %p126
      %p128 = scmp.ne.s32.totalorder %s117, %s118
      %p129 = scmp.eq.s32.totalorder %s20, 0
      %p130 = por %p128, %p129
      %p131 = scmp.ne.s32.totalorder %s117, %s118
      %p132 = scmp.eq.s32.totalorder %s21, 1
      %p133 = por %p131, %p132
      %p135 = scmp.ne.s32.totalorder %s118, %s134
      %p136 = scmp.eq.s32.totalorder %s21, 0
      %p137 = por %p135, %p136
      %s138 = ssub.s32 %s15, %s22
      %p139 = scmp.eq.s32.totalorder %s138, 0
      %s141 = sadd.s32 %s140, 1
      %s142 = scalar_select %p139, %s140, %s141
      %p145 = pneg %p139
      %p146 = scmp.eq.s32.totalorder %s15, 1
      %p147 = por %p145, %p146
      %p148 = scmp.ne.s32.totalorder %s140, %s143
      %p149 = scmp.eq.s32.totalorder %s15, 0
      %p150 = por %p148, %p149
      %p151 = scmp.ne.s32.totalorder %s140, %s143
      %p152 = scmp.eq.s32.totalorder %s20, 1
      %p153 = por %p151, %p152
      %p154 = scmp.ne.s32.totalorder %s143, %s144
      %p155 = scmp.eq.s32.totalorder %s20, 0
      %p156 = por %p154, %p155
      %p157 = scmp.ne.s32.totalorder %s143, %s144
      %p158 = scmp.eq.s32.totalorder %s21, 1
      %p159 = por %p157, %p158
      %p161 = scmp.ne.s32.totalorder %s144, %s160
      %p162 = scmp.eq.s32.totalorder %s21, 0
      %p163 = por %p161, %p162
      %p164 = scmp.le.s32.totalorder 1, %s15
      %p165 = scmp.lt.s32.totalorder %s15, 3
      %p166 = pnand %p164, %p165
      %p167 = pneg %p166
      // Predicated region
      $region9: #{tpu_custom_call.1} parent=5 // pred_check
        _
      $region10: #{tpu_custom_call.1} parent=5 // pred_check_branch
        %169 = sbr.rel (%p166) target = $region12
      $region11: #{tpu_custom_call.1} parent=5 // pred_region
        %s170 = ssub.s32 %s15, 1
        // Predicated region
        $region13: #{tpu_custom_call.1} parent=11 // pred_check
          %p171 = pneg %p62
        $region14: #{tpu_custom_call.1} parent=11 // pred_check_branch
          %173 = sbr.rel (%p171) target = $region16
        $region15: #{tpu_custom_call.1} parent=11 // pred_region
          _
        $region16: #{tpu_custom_call.1} parent=11 // pred_fallthru
          _
        // Predicated region
        $region17: #{tpu_custom_call.1} parent=11 // pred_check
          %p174 = pneg %p83
        $region18: #{tpu_custom_call.1} parent=11 // pred_check_branch
          %176 = sbr.rel (%p174) target = $region20
        $region19: #{tpu_custom_call.1} parent=11 // pred_region
          _
        $region20: #{tpu_custom_call.1} parent=11 // pred_fallthru
          _
        // Predicated region
        $region21: #{tpu_custom_call.1} parent=11 // pred_check
          %p177 = pneg %p104
        $region22: #{tpu_custom_call.1} parent=11 // pred_check_branch
          %179 = sbr.rel (%p177) target = $region24
        $region23: #{tpu_custom_call.1} parent=11 // pred_region
          _
        $region24: #{tpu_custom_call.1} parent=11 // pred_fallthru
          _
      $region12: #{tpu_custom_call.1} parent=5 // pred_fallthru
        _
      %p180 = scmp.lt.s32.totalorder %s15, 2
      // Predicated region
      $region25: #{tpu_custom_call.1} parent=5 // pred_check
        %p181 = pneg %p180
      $region26: #{tpu_custom_call.1} parent=5 // pred_check_branch
        %183 = sbr.rel (%p181) target = $region28
      $region27: #{tpu_custom_call.1} parent=5 // pred_region
        // Predicated region
        $region29: #{tpu_custom_call.1} parent=27 // pred_check
          %p184 = pneg %p35
        $region30: #{tpu_custom_call.1} parent=27 // pred_check_branch
          %186 = sbr.rel (%p184) target = $region32
        $region31: #{tpu_custom_call.1} parent=27 // pred_region
          %s187 = smul.u32 8, %s15
          %p188 = scmp.lt.s32.totalorder %s187, 15
          %s189 = scalar_select %p188, %s187, 15
          %s190 = smul.addr %s189, 4
          %s191 = scalar_lea.vmem %s0, %s190
          %s192 = smul.u32 8, %s15
        $region32: #{tpu_custom_call.1} parent=27 // pred_fallthru
          _
      $region28: #{tpu_custom_call.1} parent=5 // pred_fallthru
        _
      %p193 = scmp.le.s32.totalorder 1, %s15
      %p194 = scmp.lt.s32.totalorder %s15, 3
      %p195 = pnand %p193, %p194
      %p196 = pneg %p195
      // Predicated region
      $region33: #{tpu_custom_call.1} parent=5 // pred_check
        _
      $region34: #{tpu_custom_call.1} parent=5 // pred_check_branch
        %198 = sbr.rel (%p195) target = $region36
      $region35: #{tpu_custom_call.1} parent=5 // pred_region
        %s199 = ssub.s32 %s15, 1
        %s200 = smul.u32 8, %s20
        %p201 = scmp.lt.s32.totalorder %s200, 15
        %s202 = scalar_select %p201, %s200, 15
        %s203 = smul.addr %s202, 4
        %s204 = scalar_lea.vmem %s0, %s203
        %p205 = pneg %p41
        %p206 = pneg %p38
        %p207 = pneg %p62
        %p208 = pneg %p59
        %p209 = pneg %p83
        %p210 = pneg %p80
        %p211 = pneg %p104
        %p212 = pneg %p101
        %p213 = pneg %p130
        %p214 = pneg %p127
        %s215 = smul.u32 8, %s20
        %p216 = scmp.lt.s32.totalorder %s215, 15
        %s217 = scalar_select %p216, %s215, 15
        %s218 = smul.addr %s217, 4
        %s219 = scalar_lea.vmem %s4, %s218
        %p220 = pneg %p156
        %p221 = pneg %p153
        %s222 = sand.u32 %s143, 1
        %s223 = scalar_lea.sflag [#allocation3], %s222
        %s224 = sand.u32 %s143, 1
        %s225 = scalar_lea.vmem [#allocation2], %s224
        %s226 = smul.u32 8, %s20
        %p227 = scmp.lt.s32.totalorder %s226, 15
        %s228 = scalar_select %p227, %s226, 15
        %s229 = smul.addr %s228, 4
        %s230 = scalar_lea.vmem %s0, %s229
        %s231 = smul.u32 8, %s20
        %s232 = smul.u32 8, %s20
        %p233 = scmp.lt.s32.totalorder %s232, 15
        %s234 = scalar_select %p233, %s232, 15
        %s235 = smul.addr %s234, 4
        %s236 = scalar_lea.vmem %s4, %s235
        %s237 = smul.u32 8, %s20
        %v239 = vld [vmem:[%s230] sm:$0xf]
        %v240 = vld [vmem:[%s230 + $0x4] sm:$0xf]
        %v241 = vld [vmem:[%s230 + $0x8] sm:$0xf]
        %v242 = vld [vmem:[%s230 + $0xc] sm:$0xf]
        %v243 = vld [vmem:[%s230 + $0x10] sm:$0xf]
        %v244 = vld [vmem:[%s230 + $0x14] sm:$0xf]
        %v245 = vld [vmem:[%s230 + $0x18] sm:$0xf]
        %v246 = vld [vmem:[%s230 + $0x1c] sm:$0xf]
        %v247 = vld [vmem:[%s1] sm:$0xf]
        %v248 = vld [vmem:[%s1 + $0x4] sm:$0xf]
        %v249 = vld [vmem:[%s1 + $0x8] sm:$0xf]
        %v250 = vld [vmem:[%s1 + $0xc] sm:$0xf]
        %v251 = vld [vmem:[%s2] sm:$0x1]
        %v253 = vperm.slane %v251, 0
        %v263 = vunpack.c.l.b16 %v239
        %v264 = vunpack.c.l.b16 %v240
        %v265 = vunpack.c.l.b16 %v241
        %v266 = vunpack.c.l.b16 %v242
        %v267 = vunpack.c.l.b16 %v243
        %v268 = vunpack.c.l.b16 %v244
        %v269 = vunpack.c.l.b16 %v245
        %v270 = vunpack.c.l.b16 %v246
        %v271 = vpack.c.b16 %v264, %v263
        %v272 = vpack.c.b16 %v266, %v265
        %v273 = vpack.c.b16 %v268, %v267
        %v274 = vpack.c.b16 %v270, %v269
        %v279 = vunpack.c.l.b16 %v247
        %v280 = vunpack.c.l.b16 %v248
        %v281 = vunpack.c.l.b16 %v249
        %v282 = vunpack.c.l.b16 %v250
        %v283 = vpack.c.b16 %v280, %v279
        %v284 = vpack.c.b16 %v282, %v281
        %vm287 = vcmask 261120
        %v289 = vsel %vm287, %v271, 0
        %v292 = vsel %vm287, %v272, 0
        %v295 = vsel %vm287, %v273, 0
        %v298 = vsel %vm287, %v274, 0
        %300 = vmatpush.bf16.msra.mxu0 0
        %301 = vmatpush.bf16.msra.mxu0 0
        %302 = vmatpush.bf16.msra.mxu0 0
        %303 = vmatpush.bf16.msra.mxu0 0
        %304 = vmatpush.bf16.msra.mxu0 0
        %305 = vmatpush.bf16.msra.mxu0 0
        %306 = vmatpush.bf16.msra.mxu0 %v284
        %307 = vmatpush.bf16.msra.mxu0 %v283
        %308 = vmatmul.bf16.gmra.mxu0 %v289
        %v309 = vpop.f32.mrf.mxu0
        %v310 = vadd.f32 %v253, %v309
        %v311 = vpop.f32.mrf.mxu0
        %v312 = vadd.f32 %v253, %v311
        %313 = vmatmul.bf16.gmra.mxu0 %v292
        %v314 = vpop.f32.mrf.mxu0
        %v315 = vadd.f32 %v253, %v314
        %v316 = vpop.f32.mrf.mxu0
        %v317 = vadd.f32 %v253, %v316
        %318 = vmatmul.bf16.gmra.mxu0 %v295
        %v319 = vpop.f32.mrf.mxu0
        %v320 = vadd.f32 %v253, %v319
        %v321 = vpop.f32.mrf.mxu0
        %v322 = vadd.f32 %v253, %v321
        %323 = vmatmul.bf16.gmra.mxu0 %v298
        %v324 = vpop.f32.mrf.mxu0
        %v325 = vadd.f32 %v253, %v324
        %v326 = vpop.f32.mrf.mxu0
        %v327 = vadd.f32 %v253, %v326
        %328 = vdwg.mxu0
        %v329 = vmax.f32 %v310, 0.0
        %v330 = vmax.f32 %v312, 0.0
        %v331 = vmax.f32 %v315, 0.0
        %v332 = vmax.f32 %v317, 0.0
        %v333 = vmax.f32 %v320, 0.0
        %v334 = vmax.f32 %v322, 0.0
        %v335 = vmax.f32 %v325, 0.0
        %v336 = vmax.f32 %v327, 0.0
        %v337 = vpack.c.bf16 %v329, %v329
        %v338 = vpack.c.bf16 %v330, %v330
        %v339 = vpack.c.bf16 %v331, %v331
        %v340 = vpack.c.bf16 %v332, %v332
        %v341 = vpack.c.bf16 %v333, %v333
        %v342 = vpack.c.bf16 %v334, %v334
        %v343 = vpack.c.bf16 %v335, %v335
        %v344 = vpack.c.bf16 %v336, %v336
        %vm345 = vcmask 388096
        %346 = vst.msk [vmem:[%s236] sm:$0xf] %vm345, %v337
        %347 = vst.msk [vmem:[%s236 + $0x4] sm:$0xf] %vm345, %v338
        %348 = vst.msk [vmem:[%s236 + $0x8] sm:$0xf] %vm345, %v339
        %349 = vst.msk [vmem:[%s236 + $0xc] sm:$0xf] %vm345, %v340
        %350 = vst.msk [vmem:[%s236 + $0x10] sm:$0xf] %vm345, %v341
        %351 = vst.msk [vmem:[%s236 + $0x14] sm:$0xf] %vm345, %v342
        %352 = vst.msk [vmem:[%s236 + $0x18] sm:$0xf] %vm345, %v343
        %353 = vst.msk [vmem:[%s236 + $0x1c] sm:$0xf] %vm345, %v344
        %v354 = vld [vmem:[%s3] sm:$0x1]
        %v363 = vunpack.c.l.b16 %v337
        %v364 = vunpack.c.l.b16 %v338
        %v365 = vunpack.c.l.b16 %v339
        %v366 = vunpack.c.l.b16 %v340
        %v367 = vunpack.c.l.b16 %v341
        %v368 = vunpack.c.l.b16 %v342
        %v369 = vunpack.c.l.b16 %v343
        %v370 = vunpack.c.l.b16 %v344
        %v371 = vpack.c.b16 %v364, %v363
        %v372 = vpack.c.b16 %v366, %v365
        %v373 = vpack.c.b16 %v368, %v367
        %v374 = vpack.c.b16 %v370, %v369
        %vm379 = vcmask 523264
        %v381 = vsel %vm379, %v354, 0
        %383 = vmatpush.bf16.msra.mxu0 0
        %384 = vmatpush.bf16.msra.mxu0 0
        %385 = vmatpush.bf16.msra.mxu0 0
        %386 = vmatpush.bf16.msra.mxu0 0
        %387 = vmatpush.bf16.msra.mxu0 %v374
        %388 = vmatpush.bf16.msra.mxu0 %v373
        %389 = vmatpush.bf16.msra.mxu0 %v372
        %390 = vmatpush.bf16.msra.mxu0 %v371
        %391 = vmatmul.bf16.gmra.mxu0 %v381
        %v392 = vpop.f32.mrf.mxu0
        %v393 = vadd.f32 0.0, %v392
        %v394 = vpop.f32.mrf.mxu0
        %395 = vdwg.mxu0
        %vm396 = vcmask 385024
        %397 = vst.msk [vmem:[%s225] sm:$0x1] %vm396, %v393
        %s398 = smul.u32 8, %s20
        %p399 = scmp.lt.s32.totalorder %s398, 15
        %s400 = scalar_select %p399, %s398, 15
        %s401 = smul.addr %s400, 4
        %s402 = scalar_lea.vmem %s4, %s401
        %s403 = sand.u32 %s143, 1
        %s404 = scalar_lea.sflag [#allocation3], %s403
        %s405 = sand.u32 %s143, 1
        %s406 = scalar_lea.vmem [#allocation2], %s405
        // Predicated region
        $region37: #{tpu_custom_call.1} parent=35 // pred_check
          %p407 = pneg %p127
        $region38: #{tpu_custom_call.1} parent=35 // pred_check_branch
          %409 = sbr.rel (%p407) target = $region40
        $region39: #{tpu_custom_call.1} parent=35 // pred_region
          %s410 = smul.u32 8, %s20
        $region40: #{tpu_custom_call.1} parent=35 // pred_fallthru
          _
        // Predicated region
        $region41: #{tpu_custom_call.1} parent=35 // pred_check
          %p411 = pneg %p153
        $region42: #{tpu_custom_call.1} parent=35 // pred_check_branch
          %413 = sbr.rel (%p411) target = $region44
        $region43: #{tpu_custom_call.1} parent=35 // pred_region
          %415 = vsyncadd %s404, 0
          %s416 = scalar_lea.hbm %s5, %s20
          %s418 = sshll.u32 %s406, 4
          %s419 = int_to_ptr.vmem [resolvable:$true] %s418
          %s420 = sshll.u32 %s416, 4
          %s421 = int_to_ptr.hbm [resolvable:$true] %s420
          %423 = dma.vmem_to_hbm [thread:$0]  %s419, 16, %s421, %s404
        $region44: #{tpu_custom_call.1} parent=35 // pred_fallthru
          _
      $region36: #{tpu_custom_call.1} parent=5 // pred_fallthru
        _
      %p424 = scmp.le.s32.totalorder 2, %s15
      // Predicated region
      $region45: #{tpu_custom_call.1} parent=5 // pred_check
        %p425 = pneg %p424
      $region46: #{tpu_custom_call.1} parent=5 // pred_check_branch
        %427 = sbr.rel (%p425) target = $region48
      $region47: #{tpu_custom_call.1} parent=5 // pred_region
        %s428 = ssub.s32 %s15, 2
        // Predicated region
        $region49: #{tpu_custom_call.1} parent=47 // pred_check
          %p429 = pneg %p133
        $region50: #{tpu_custom_call.1} parent=47 // pred_check_branch
          %431 = sbr.rel (%p429) target = $region52
        $region51: #{tpu_custom_call.1} parent=47 // pred_region
          %s432 = smul.u32 8, %s21
          %p433 = scmp.lt.s32.totalorder %s432, 15
          %s434 = scalar_select %p433, %s432, 15
          %s435 = smul.addr %s434, 4
          %s436 = scalar_lea.vmem %s4, %s435
        $region52: #{tpu_custom_call.1} parent=47 // pred_fallthru
          _
        // Predicated region
        $region53: #{tpu_custom_call.1} parent=47 // pred_check
          %p437 = pneg %p159
        $region54: #{tpu_custom_call.1} parent=47 // pred_check_branch
          %439 = sbr.rel (%p437) target = $region56
        $region55: #{tpu_custom_call.1} parent=47 // pred_region
          %s440 = sand.u32 %s144, 1
          %s441 = scalar_lea.sflag [#allocation3], %s440
          %s442 = sand.u32 %s144, 1
          %s443 = scalar_lea.vmem [#allocation2], %s442
          %445 = dma.done %s441, 16
        $region56: #{tpu_custom_call.1} parent=47 // pred_fallthru
          _
      $region48: #{tpu_custom_call.1} parent=5 // pred_fallthru
        _
    $region6: #{tpu_custom_call.1} parent=1 // loop_footer
      %s19 = sadd.s32 1, %s15
    $region7: #{tpu_custom_call.1} parent=1 // loop_footer_branch
      %14 = sbr.rel target = $region3
    $region8: #{tpu_custom_call.1} parent=1 // loop_exit
      _
    %446 = vsyncpa [#allocation3], 1
    %s447 = scalar_lea.sflag [#allocation3], 1
    %448 = vsyncpa %s447, 1

</llo_original>
